<compile_context>
chip_gen: v5e
topology: v5e:2x2
jax: 0.10.0
libtpu: 0.0.40
codegen_flags: <defaults>
</compile_context>

<pallas_src>
import jax
import jax.numpy as jnp
from jax.experimental import pallas as pl
from jax.experimental.pallas import tpu as pltpu

N_UNITS = 30          # params['N_units']
OUT_PAD = 128         # padded output width for lane-dense stores
CONV_CH = 128         # folded conv output channels


def _round_up(x, m):
    return (x + m - 1) // m * m


def _vmem_budget_bytes():
    """Generation-aware scoped-VMEM budget (v7x has only 64 MiB physical)."""
    try:
        kind = jax.devices()[0].device_kind.lower()
    except Exception:
        kind = ""
    if any(t in kind for t in ("v4", "v5", "v6")):
        return 96 * 1024 * 1024      # 128 MiB physical VMEM per core
    return 48 * 1024 * 1024          # v7x / unknown: 64 MiB physical


def _pick_blocks(B, N, vmem_budget):
    """Choose (block_b, block_n) so block_b*block_n points are processed per
    grid step.  VMEM/step ~ 512 B/pt for the lane-padded (.,.,3) x tile (x2 for
    double buffering) + 512 B/pt for the f32 (R,128) conv activation."""
    rows_target = int(vmem_budget * 0.5) // 1536
    rows_target = max(1024, min(49152, rows_target))
    n_pad = _round_up(N, 8)
    if n_pad <= rows_target:
        block_n = n_pad
        block_b = max(8, min(_round_up(B, 8), (rows_target // block_n) // 8 * 8))
    else:
        block_b = 8
        block_n = max(8, (rows_target // 8) // 8 * 8)
    return block_b, block_n


def encoder_kernel(x_ref, w12_ref, b12_ref, w3_ref, b3_ref, w4_ref, b4_ref,
                   o_ref, acc_ref):
    ni = pl.program_id(1)
    tb, nc, _ = x_ref.shape

    @pl.when(ni == 0)
    def _init():
        acc_ref[...] = jnp.full_like(acc_ref, -jnp.inf)

    # Folded conv1+bn1+conv2+bn2: per-point 3 -> 128 affine on the MXU.
    # (The bias is added after the pool; it commutes with max.)
    x = x_ref[...].reshape(tb * nc, 3)                              # layout-free (nc % 8 == 0)
    h = jnp.dot(x, w12_ref[...], preferred_element_type=jnp.float32)    # (R, 128)

    # Running max over the point axis (per-sample), kept in VMEM scratch.
    acc_ref[...] = jnp.maximum(acc_ref[...],
                               jnp.max(h.reshape(tb, nc, CONV_CH), axis=1))

    # Finalize once per batch block: pooled bias + the small MLP head.
    @pl.when(ni == pl.num_programs(1) - 1)
    def _head():
        pooled = acc_ref[...] + b12_ref[...]                        # (TB, 128)
        l1 = jnp.tanh(jnp.dot(pooled, w3_ref[...],
                              preferred_element_type=jnp.float32) + b3_ref[...])
        out = jnp.tanh(jnp.dot(l1, w4_ref[...],
                               preferred_element_type=jnp.float32) + b4_ref[...])
        o_ref[...] = out                                            # (TB, 128) lane-dense


def encoder_forward(x, p, *, block_rows=None, vmem_budget=None):
    """x: (B, N, 3) float32 -> (B, N_UNITS) float32 (inference-mode BN)."""
    B, N, C = x.shape
    assert C == 3
    f32 = jnp.float32

    # --- fold bn1/bn2 (inference form) into the convs, then fold the two convs
    #     (no intervening nonlinearity) into ONE 3 -> 128 affine ---
    w1f = (p["w1"] * p["s1"]).astype(f32)               # (3, 64)
    b1f = (p["b1"] * p["s1"] + p["t1"]).astype(f32)     # (1, 64)
    w2f = (p["w2"] * p["s2"]).astype(f32)               # (64, 128)
    b2f = (p["b2"] * p["s2"] + p["t2"]).astype(f32)     # (1, 128)
    w12 = w1f @ w2f                                     # (3, 128)
    b12 = b1f @ w2f + b2f                               # (1, 128)
    w3 = p["w3"].astype(f32)                            # (128, 64)
    b3 = p["b3"].astype(f32)                            # (1, 64)
    # pad last layer 30 -> 128 output channels (zeros) for lane-dense stores
    w4 = jnp.zeros((64, OUT_PAD), f32).at[:, :N_UNITS].set(p["w4"].astype(f32))
    b4 = jnp.zeros((1, OUT_PAD), f32).at[:, :N_UNITS].set(p["b4"].astype(f32))

    if vmem_budget is None:
        vmem_budget = _vmem_budget_bytes()
    if block_rows is None:
        block_b, block_n = _pick_blocks(B, N, vmem_budget)
    else:
        block_b, block_n = block_rows
    assert block_b % 8 == 0 and block_n % 8 == 0

    b_pad = _round_up(B, block_b)
    n_pad = _round_up(N, block_n)
    if (b_pad, n_pad) != (B, N):
        # Edge-replication padding: duplicated points cannot change the max and
        # padded batch rows are sliced off below -> no in-kernel masking.
        x = jnp.pad(x, ((0, b_pad - B), (0, n_pad - N), (0, 0)), mode="edge")

    grid = (b_pad // block_b, n_pad // block_n)
    params = (w12, b12, w3, b3, w4, b4)

    def const_spec(a):
        return pl.BlockSpec(a.shape, lambda b, n, _nd=a.ndim: (0,) * _nd)

    cost = pl.CostEstimate(
        flops=2 * b_pad * n_pad * 3 * CONV_CH
              + 2 * b_pad * (128 * 64 + 64 * OUT_PAD),
        transcendentals=b_pad * (64 + OUT_PAD),
        bytes_accessed=b_pad * n_pad * 3 * 4 + b_pad * OUT_PAD * 4
                       + sum(int(a.size) * 4 for a in params),
    )

    out = pl.pallas_call(
        encoder_kernel,
        out_shape=jax.ShapeDtypeStruct((b_pad, OUT_PAD), f32),
        grid_spec=pltpu.PrefetchScalarGridSpec(
            num_scalar_prefetch=0,
            grid=grid,
            in_specs=[pl.BlockSpec((block_b, block_n, 3), lambda b, n: (b, n, 0))]
                     + [const_spec(a) for a in params],
            out_specs=pl.BlockSpec((block_b, OUT_PAD), lambda b, n: (b, 0)),
            scratch_shapes=[pltpu.VMEM((block_b, CONV_CH), f32)],
        ),
        compiler_params=pltpu.CompilerParams(
            dimension_semantics=("parallel", "arbitrary"),
            vmem_limit_bytes=vmem_budget),
        cost_estimate=cost,
    )(x, *params)

    return out[:B, :N_UNITS]


def encoder_reference(x, p):
    """Pure-JAX reference (unfolded BN, unfolded convs) for correctness."""
    h1 = x @ p["w1"] + p["b1"]
    h1 = h1 * p["s1"] + p["t1"]
    h2 = h1 @ p["w2"] + p["b2"]
    h2 = h2 * p["s2"] + p["t2"]
    pooled = jnp.max(h2, axis=1)                    # (B, 128)
    l1 = jnp.tanh(pooled @ p["w3"] + p["b3"])
    return jnp.tanh(l1 @ p["w4"] + p["b4"])


def make_params(key):
    """Deterministic synthetic parameters matching the PyTorch module shapes."""
    ks = jax.random.split(key, 16)
    eps = 1e-5
    f32 = jnp.float32

    # conv1: (64, 1, 1, 3) -> dense (3, 64); bias (64,)
    w1 = jax.random.normal(ks[0], (3, 64), f32) * 0.2
    b1 = jax.random.normal(ks[1], (1, 64), f32) * 0.05
    # bn1 running stats / affine -> per-channel scale/shift
    g1 = 1.0 + 0.1 * jax.random.normal(ks[2], (1, 64), f32)
    be1 = 0.05 * jax.random.normal(ks[3], (1, 64), f32)
    m1 = 0.05 * jax.random.normal(ks[4], (1, 64), f32)
    v1 = 0.5 + jnp.abs(jax.random.normal(ks[5], (1, 64), f32))
    s1 = g1 / jnp.sqrt(v1 + eps)
    t1 = be1 - m1 * s1

    # conv2: (128, 64, 1, 1) -> dense (64, 128); bias (128,)
    w2 = jax.random.normal(ks[6], (64, 128), f32) * 0.1
    b2 = jax.random.normal(ks[7], (1, 128), f32) * 0.05
    # bn2
    g2 = 1.0 + 0.1 * jax.random.normal(ks[8], (1, 128), f32)
    be2 = 0.05 * jax.random.normal(ks[9], (1, 128), f32)
    m2 = 0.05 * jax.random.normal(ks[10], (1, 128), f32)
    v2 = 0.5 + jnp.abs(jax.random.normal(ks[11], (1, 128), f32))
    s2 = g2 / jnp.sqrt(v2 + eps)
    t2 = be2 - m2 * s2

    # linear1: weight (64, 128) -> (128, 64); bias (64,)
    w3 = jax.random.normal(ks[12], (128, 64), f32) * 0.1
    b3 = jax.random.normal(ks[13], (1, 64), f32) * 0.05
    # linear2: weight (30, 64) -> (64, 30); bias (30,)
    w4 = jax.random.normal(ks[14], (64, N_UNITS), f32) * 0.1
    b4 = jax.random.normal(ks[15], (1, N_UNITS), f32) * 0.05

    return dict(w1=w1, b1=b1, s1=s1, t1=t1,
                w2=w2, b2=b2, s2=s2, t2=t2,
                w3=w3, b3=b3, w4=w4, b4=b4)


if __name__ == "__main__":
    key = jax.random.PRNGKey(0)
    kx, kp, kx2 = jax.random.split(key, 3)
    p = make_params(kp)

    # Case 1: tiny shape, single point chunk (auto block selection).
    B, N_POINTS = 2, 16
    x = jax.random.normal(kx, (B, N_POINTS, 3), jnp.float32)
    out = jax.block_until_ready(encoder_forward(x, p))
    ref = encoder_reference(x, p)
    assert out.shape == (B, N_UNITS), out.shape
    assert jnp.allclose(out, ref, atol=1e-4, rtol=1e-4), "mismatch vs reference (case 1)"

    # Case 2: ragged batch/point counts + forced multi-chunk point tiling,
    # exercising the running-max accumulator, edge padding and batch padding.
    B2, N2 = 3, 40
    x2 = jax.random.normal(kx2, (B2, N2, 3), jnp.float32)
    out2 = jax.block_until_ready(encoder_forward(x2, p, block_rows=(8, 16)))
    ref2 = encoder_reference(x2, p)
    assert out2.shape == (B2, N_UNITS), out2.shape
    assert jnp.allclose(out2, ref2, atol=1e-4, rtol=1e-4), "mismatch vs reference (case 2)"

    print("KERNEL_OK")
</pallas_src>

<mosaic_0001>
module attributes {stable_mosaic.version = 11 : i64} {
  func.func @encoder_kernel(%arg0: i32, %arg1: i32, %arg2: memref<8x16x3xf32, #tpu.memory_space<vmem>>, %arg3: memref<3x128xf32, #tpu.memory_space<vmem>>, %arg4: memref<1x128xf32, #tpu.memory_space<vmem>>, %arg5: memref<128x64xf32, #tpu.memory_space<vmem>>, %arg6: memref<1x64xf32, #tpu.memory_space<vmem>>, %arg7: memref<64x128xf32, #tpu.memory_space<vmem>>, %arg8: memref<1x128xf32, #tpu.memory_space<vmem>>, %arg9: memref<8x128xf32, #tpu.memory_space<vmem>>, %arg10: memref<8x128xf32, #tpu.memory_space<vmem>>) attributes {dimension_semantics = [#tpu.dimension_semantics<parallel>, #tpu.dimension_semantics<arbitrary>], iteration_bounds = array<i64: 1, 1>, scalar_prefetch = 0 : i64, scratch_operands = 1 : i64, tpu.core_type = #tpu.core_type<tc>, window_params = [{transform_indices = @transform_0, window_bounds = array<i64: 8, 16, 3>}, {pipeline_mode = #tpu.pipeline_mode<synchronous>, transform_indices = @transform_1, window_bounds = array<i64: 3, 128>}, {pipeline_mode = #tpu.pipeline_mode<synchronous>, transform_indices = @transform_2, window_bounds = array<i64: 1, 128>}, {pipeline_mode = #tpu.pipeline_mode<synchronous>, transform_indices = @transform_3, window_bounds = array<i64: 128, 64>}, {pipeline_mode = #tpu.pipeline_mode<synchronous>, transform_indices = @transform_4, window_bounds = array<i64: 1, 64>}, {pipeline_mode = #tpu.pipeline_mode<synchronous>, transform_indices = @transform_5, window_bounds = array<i64: 64, 128>}, {pipeline_mode = #tpu.pipeline_mode<synchronous>, transform_indices = @transform_6, window_bounds = array<i64: 1, 128>}, {transform_indices = @transform_7, window_bounds = array<i64: 8, 128>}]} {
    %c0_i32 = arith.constant 0 : i32
    %0 = arith.cmpi eq, %arg1, %c0_i32 : i32
    %1 = arith.extui %0 : i1 to i32
    %c0_i32_0 = arith.constant 0 : i32
    %2 = arith.cmpi ne, %1, %c0_i32_0 : i32
    scf.if %2 {
      %cst_12 = arith.constant 0xFF800000 : f32
      %15 = vector.broadcast %cst_12 : f32 to vector<8x128xf32>
      %c0_13 = arith.constant 0 : index
      %c0_14 = arith.constant 0 : index
      %16 = vector.load %arg10[%c0_13, %c0_14] : memref<8x128xf32, #tpu.memory_space<vmem>>, vector<8x128xf32>
      tpu.vector_store %arg10[%c0_13, %c0_14], %15 {strides = array<i32>} : memref<8x128xf32, #tpu.memory_space<vmem>>, vector<8x128xf32>,
    } else {
    }
    %c0 = arith.constant 0 : index
    %c0_1 = arith.constant 0 : index
    %c0_2 = arith.constant 0 : index
    %3 = vector.load %arg2[%c0, %c0_1, %c0_2] : memref<8x16x3xf32, #tpu.memory_space<vmem>>, vector<8x16x3xf32>
    %4 = vector.shape_cast %3 : vector<8x16x3xf32> to vector<128x3xf32>
    %c0_3 = arith.constant 0 : index
    %c0_4 = arith.constant 0 : index
    %5 = vector.load %arg3[%c0_3, %c0_4] : memref<3x128xf32, #tpu.memory_space<vmem>>, vector<3x128xf32>
    %cst = arith.constant dense<0.000000e+00> : vector<128x128xf32>
    %6 = tpu.matmul %4, %5, %cst {dimension_numbers = #tpu.dot_dimension_numbers<[1], [0], [0], [1], [0, 0, 1, 1], [], []>} : vector<128x3xf32>, vector<3x128xf32>, vector<128x128xf32> -> vector<128x128xf32>
    %c0_5 = arith.constant 0 : index
    %c0_6 = arith.constant 0 : index
    %7 = vector.load %arg10[%c0_5, %c0_6] : memref<8x128xf32, #tpu.memory_space<vmem>>, vector<8x128xf32>
    %8 = vector.shape_cast %6 : vector<128x128xf32> to vector<8x16x128xf32>
    %cst_7 = arith.constant dense<0xFF800000> : vector<8x128xf32>
    %9 = vector.multi_reduction <maximumf>, %8, %cst_7 [1] : vector<8x16x128xf32> to vector<8x128xf32>
    %10 = arith.maximumf %7, %9 : vector<8x128xf32>
    %c0_8 = arith.constant 0 : index
    %c0_9 = arith.constant 0 : index
    %11 = vector.load %arg10[%c0_8, %c0_9] : memref<8x128xf32, #tpu.memory_space<vmem>>, vector<8x128xf32>
    tpu.vector_store %arg10[%c0_8, %c0_9], %10 {strides = array<i32>} : memref<8x128xf32, #tpu.memory_space<vmem>>, vector<8x128xf32>,
    %c0_i32_10 = arith.constant 0 : i32
    %12 = arith.cmpi eq, %arg1, %c0_i32_10 : i32
    %13 = arith.extui %12 : i1 to i32
    %c0_i32_11 = arith.constant 0 : i32
    %14 = arith.cmpi ne, %13, %c0_i32_11 : i32
    scf.if %14 {
      %c0_12 = arith.constant 0 : index
      %c0_13 = arith.constant 0 : index
      %15 = vector.load %arg10[%c0_12, %c0_13] : memref<8x128xf32, #tpu.memory_space<vmem>>, vector<8x128xf32>
      %c0_14 = arith.constant 0 : index
      %c0_15 = arith.constant 0 : index
      %16 = vector.load %arg4[%c0_14, %c0_15] : memref<1x128xf32, #tpu.memory_space<vmem>>, vector<1x128xf32>
      %17 = vector.broadcast %16 : vector<1x128xf32> to vector<8x128xf32>
      %18 = arith.addf %15, %17 : vector<8x128xf32>
      %c0_16 = arith.constant 0 : index
      %c0_17 = arith.constant 0 : index
      %19 = vector.load %arg5[%c0_16, %c0_17] : memref<128x64xf32, #tpu.memory_space<vmem>>, vector<128x64xf32>
      %cst_18 = arith.constant dense<0.000000e+00> : vector<8x64xf32>
      %20 = tpu.matmul %18, %19, %cst_18 {dimension_numbers = #tpu.dot_dimension_numbers<[1], [0], [0], [1], [0, 0, 1, 1], [], []>} : vector<8x128xf32>, vector<128x64xf32>, vector<8x64xf32> -> vector<8x64xf32>
      %c0_19 = arith.constant 0 : index
      %c0_20 = arith.constant 0 : index
      %21 = vector.load %arg6[%c0_19, %c0_20] : memref<1x64xf32, #tpu.memory_space<vmem>>, vector<1x64xf32>
      %22 = vector.broadcast %21 : vector<1x64xf32> to vector<8x64xf32>
      %23 = arith.addf %20, %22 : vector<8x64xf32>
      %24 = math.tanh %23 : vector<8x64xf32>
      %c0_21 = arith.constant 0 : index
      %c0_22 = arith.constant 0 : index
      %25 = vector.load %arg7[%c0_21, %c0_22] : memref<64x128xf32, #tpu.memory_space<vmem>>, vector<64x128xf32>
      %cst_23 = arith.constant dense<0.000000e+00> : vector<8x128xf32>
      %26 = tpu.matmul %24, %25, %cst_23 {dimension_numbers = #tpu.dot_dimension_numbers<[1], [0], [0], [1], [0, 0, 1, 1], [], []>} : vector<8x64xf32>, vector<64x128xf32>, vector<8x128xf32> -> vector<8x128xf32>
      %c0_24 = arith.constant 0 : index
      %c0_25 = arith.constant 0 : index
      %27 = vector.load %arg8[%c0_24, %c0_25] : memref<1x128xf32, #tpu.memory_space<vmem>>, vector<1x128xf32>
      %28 = vector.broadcast %27 : vector<1x128xf32> to vector<8x128xf32>
      %29 = arith.addf %26, %28 : vector<8x128xf32>
      %30 = math.tanh %29 : vector<8x128xf32>
      %c0_26 = arith.constant 0 : index
      %c0_27 = arith.constant 0 : index
      %31 = vector.load %arg9[%c0_26, %c0_27] : memref<8x128xf32, #tpu.memory_space<vmem>>, vector<8x128xf32>
      tpu.vector_store %arg9[%c0_26, %c0_27], %30 {strides = array<i32>} : memref<8x128xf32, #tpu.memory_space<vmem>>, vector<8x128xf32>,
    } else {
    }
    return
  }
  func.func @transform_0(%arg0: i32, %arg1: i32) -> (i32, i32, i32) {
    %c0_i32 = arith.constant 0 : i32
    %c0_i32_0 = arith.constant 0 : i32
    return %arg0, %arg1, %c0_i32 : i32, i32, i32
  }
  func.func @transform_1(%arg0: i32, %arg1: i32) -> (i32, i32) {
    %c0_i32 = arith.constant 0 : i32
    %c0_i32_0 = arith.constant 0 : i32
    %c0_i32_1 = arith.constant 0 : i32
    return %c0_i32, %c0_i32_0 : i32, i32
  }
  func.func @transform_2(%arg0: i32, %arg1: i32) -> (i32, i32) {
    %c0_i32 = arith.constant 0 : i32
    %c0_i32_0 = arith.constant 0 : i32
    %c0_i32_1 = arith.constant 0 : i32
    return %c0_i32, %c0_i32_0 : i32, i32
  }
  func.func @transform_3(%arg0: i32, %arg1: i32) -> (i32, i32) {
    %c0_i32 = arith.constant 0 : i32
    %c0_i32_0 = arith.constant 0 : i32
    %c0_i32_1 = arith.constant 0 : i32
    return %c0_i32, %c0_i32_0 : i32, i32
  }
  func.func @transform_4(%arg0: i32, %arg1: i32) -> (i32, i32) {
    %c0_i32 = arith.constant 0 : i32
    %c0_i32_0 = arith.constant 0 : i32
    %c0_i32_1 = arith.constant 0 : i32
    return %c0_i32, %c0_i32_0 : i32, i32
  }
  func.func @transform_5(%arg0: i32, %arg1: i32) -> (i32, i32) {
    %c0_i32 = arith.constant 0 : i32
    %c0_i32_0 = arith.constant 0 : i32
    %c0_i32_1 = arith.constant 0 : i32
    return %c0_i32, %c0_i32_0 : i32, i32
  }
  func.func @transform_6(%arg0: i32, %arg1: i32) -> (i32, i32) {
    %c0_i32 = arith.constant 0 : i32
    %c0_i32_0 = arith.constant 0 : i32
    %c0_i32_1 = arith.constant 0 : i32
    return %c0_i32, %c0_i32_0 : i32, i32
  }
  func.func @transform_7(%arg0: i32, %arg1: i32) -> (i32, i32) {
    %c0_i32 = arith.constant 0 : i32
    %c0_i32_0 = arith.constant 0 : i32
    return %arg0, %c0_i32 : i32, i32
  }
}

</mosaic_0001>

<llo_original>
// kernel: tpu_custom_call.1
$region0: #{tpu_custom_call.1}
  #allocation0 [shape = 'u32[]', space=smem, size = 0x4, offset = 0x4, fixed_abs, tag = 'smem constant byte address 0x4 - core index']
  #allocation1 [shape = 'u32[72,128]{1,0:T(1,128)}', space=vmem, size = 0x9000, scoped, tag = 'internal scratch']
  #allocation2 [shape = 'f32[8,128]{1,0:T(8,128)}', space=vmem, size = 0x1000, scoped, tag = 'scratch operand']
  %s0 = inlined_call_operand.vmem [shape: f32[8,16,3], index: 0, kind: input, shape index: {}]
  %s1 = inlined_call_operand.vmem [shape: f32[3,128], index: 1, kind: input, shape index: {}]
  %s2 = inlined_call_operand.vmem [shape: f32[1,128], index: 2, kind: input, shape index: {}]
  %s3 = inlined_call_operand.vmem [shape: f32[128,64], index: 3, kind: input, shape index: {}]
  %s4 = inlined_call_operand.vmem [shape: f32[1,64], index: 4, kind: input, shape index: {}]
  %s5 = inlined_call_operand.vmem [shape: f32[64,128], index: 5, kind: input, shape index: {}]
  %s6 = inlined_call_operand.vmem [shape: f32[1,128], index: 6, kind: input, shape index: {}]
  %s7 = inlined_call_operand.hbm [shape: f32[8,128], index: 7, kind: output, shape index: {}]
  %s8 = sld [smem:[#allocation0]]
  $region46: #{tpu_custom_call.1} parent=0
    _
  %s10 = ssub.s32 1, %s8
  %s11 = scalar_select 0, %s10, %s8
  $region1: #{tpu_custom_call.1} parent=0
    #allocation3 [shape = 'u8[4096]{0}', space=vmem, size = 0x1000, scoped, tag = 'output window, operand 0, single buffered']
    #allocation4 [shape = 's32[1]{0}', space=sflag, size = 0x4, scoped, tag = 'scoped memory for tpu_custom_call.1']
    %12 = vsyncpa [#allocation4], 0
    // Predicated region
    $region2: #{tpu_custom_call.1} parent=1 // pred_check
      _
    $region3: #{tpu_custom_call.1} parent=1 // pred_check_branch
      %14 = sbr.rel (0) target = $region5
    $region4: #{tpu_custom_call.1} parent=1 // pred_region
      _
    $region5: #{tpu_custom_call.1} parent=1 // pred_fallthru
      _
    // Predicated region
    $region6: #{tpu_custom_call.1} parent=1 // pred_check
      _
    $region7: #{tpu_custom_call.1} parent=1 // pred_check_branch
      %16 = sbr.rel (0) target = $region9
    $region8: #{tpu_custom_call.1} parent=1 // pred_region
      _
    $region9: #{tpu_custom_call.1} parent=1 // pred_fallthru
      _
    // Predicated region
    $region10: #{tpu_custom_call.1} parent=1 // pred_check
      _
    $region11: #{tpu_custom_call.1} parent=1 // pred_check_branch
      %18 = sbr.rel (0) target = $region13
    $region12: #{tpu_custom_call.1} parent=1 // pred_region
      _
    $region13: #{tpu_custom_call.1} parent=1 // pred_fallthru
      _
    // Predicated region
    $region14: #{tpu_custom_call.1} parent=1 // pred_check
      _
    $region15: #{tpu_custom_call.1} parent=1 // pred_check_branch
      %20 = sbr.rel (0) target = $region17
    $region16: #{tpu_custom_call.1} parent=1 // pred_region
      _
    $region17: #{tpu_custom_call.1} parent=1 // pred_fallthru
      _
    // Predicated region
    $region18: #{tpu_custom_call.1} parent=1 // pred_check
      _
    $region19: #{tpu_custom_call.1} parent=1 // pred_check_branch
      %22 = sbr.rel (0) target = $region21
    $region20: #{tpu_custom_call.1} parent=1 // pred_region
      _
    $region21: #{tpu_custom_call.1} parent=1 // pred_fallthru
      _
    // Predicated region
    $region22: #{tpu_custom_call.1} parent=1 // pred_check
      _
    $region23: #{tpu_custom_call.1} parent=1 // pred_check_branch
      %24 = sbr.rel (0) target = $region25
    $region24: #{tpu_custom_call.1} parent=1 // pred_region
      _
    $region25: #{tpu_custom_call.1} parent=1 // pred_fallthru
      _
    // Predicated region
    $region26: #{tpu_custom_call.1} parent=1 // pred_check
      _
    $region27: #{tpu_custom_call.1} parent=1 // pred_check_branch
      %26 = sbr.rel (0) target = $region29
    $region28: #{tpu_custom_call.1} parent=1 // pred_region
      _
    $region29: #{tpu_custom_call.1} parent=1 // pred_fallthru
      _
    %p27 = scmp.eq.s32.totalorder 0, 0
    // Predicated region
    $region30: #{tpu_custom_call.1} parent=1 // pred_check
      %p28 = pneg %p27
    $region31: #{tpu_custom_call.1} parent=1 // pred_check_branch
      %30 = sbr.rel (%p28) target = $region33
    $region32: #{tpu_custom_call.1} parent=1 // pred_region
      %31 = vst [vmem:[#allocation2] sm:$0xff] -inf
    $region33: #{tpu_custom_call.1} parent=1 // pred_fallthru
      _
    %v32 = vld [vmem:[%s0] sm:$0xff]
    %v33 = vld [vmem:[%s0 + $0x8] sm:$0xff]
    %v34 = vld [vmem:[%s0 + $0x10] sm:$0xff]
    %v35 = vld [vmem:[%s0 + $0x18] sm:$0xff]
    %v36 = vld [vmem:[%s0 + $0x20] sm:$0xff]
    %v37 = vld [vmem:[%s0 + $0x28] sm:$0xff]
    %v38 = vld [vmem:[%s0 + $0x30] sm:$0xff]
    %v39 = vld [vmem:[%s0 + $0x38] sm:$0xff]
    %v40 = vld [vmem:[%s0 + $0x40] sm:$0xff]
    %v41 = vld [vmem:[%s0 + $0x48] sm:$0xff]
    %v42 = vld [vmem:[%s0 + $0x50] sm:$0xff]
    %v43 = vld [vmem:[%s0 + $0x58] sm:$0xff]
    %v44 = vld [vmem:[%s0 + $0x60] sm:$0xff]
    %v45 = vld [vmem:[%s0 + $0x68] sm:$0xff]
    %v46 = vld [vmem:[%s0 + $0x70] sm:$0xff]
    %v47 = vld [vmem:[%s0 + $0x78] sm:$0xff]
    %v48 = vld [vmem:[%s1] sm:$0x7]
    %vm49 = vcmask 23552
    %v51 = vsel %vm49, %v32, 0
    %v54 = vsel %vm49, %v33, 0
    %v57 = vsel %vm49, %v34, 0
    %v60 = vsel %vm49, %v35, 0
    %v63 = vsel %vm49, %v36, 0
    %v66 = vsel %vm49, %v37, 0
    %v69 = vsel %vm49, %v38, 0
    %v72 = vsel %vm49, %v39, 0
    %v75 = vsel %vm49, %v40, 0
    %v78 = vsel %vm49, %v41, 0
    %v81 = vsel %vm49, %v42, 0
    %v84 = vsel %vm49, %v43, 0
    %v87 = vsel %vm49, %v44, 0
    %v90 = vsel %vm49, %v45, 0
    %v93 = vsel %vm49, %v46, 0
    %v96 = vsel %vm49, %v47, 0
    %vm98 = vcmask 1042432
    %v100 = vsel %vm98, %v48, 0
    %102 = vmatpush.msra.mxu0 0.0
    %103 = vmatpush.msra.mxu0 0.0
    %104 = vmatpush.msra.mxu0 0.0
    %105 = vmatpush.msra.mxu0 0.0
    %106 = vmatpush.msra.mxu0 0.0
    %107 = vmatpush.msra.mxu0 0.0
    %108 = vmatpush.msra.mxu0 0.0
    %109 = vmatpush.msra.mxu0 0.0
    %110 = vmatpush.msra.mxu0 0.0
    %111 = vmatpush.msra.mxu0 0.0
    %112 = vmatpush.msra.mxu0 0.0
    %113 = vmatpush.msra.mxu0 0.0
    %114 = vmatpush.msra.mxu0 0.0
    %115 = vmatpush.msra.mxu0 0.0
    %116 = vmatpush.msra.mxu0 0.0
    %117 = vmatpush.msra.mxu0 %v100
    %118 = vmatmul.f32.gmra.mxu0 %v51
    %v119 = vpop.f32.mrf.mxu0
    %v120 = vadd.f32 0.0, %v119
    %121 = vmatmul.f32.gmra.mxu0 %v54
    %v122 = vpop.f32.mrf.mxu0
    %v123 = vadd.f32 0.0, %v122
    %124 = vmatmul.f32.gmra.mxu0 %v57
    %v125 = vpop.f32.mrf.mxu0
    %v126 = vadd.f32 0.0, %v125
    %127 = vmatmul.f32.gmra.mxu0 %v60
    %v128 = vpop.f32.mrf.mxu0
    %v129 = vadd.f32 0.0, %v128
    %130 = vmatmul.f32.gmra.mxu0 %v63
    %v131 = vpop.f32.mrf.mxu0
    %v132 = vadd.f32 0.0, %v131
    %133 = vmatmul.f32.gmra.mxu0 %v66
    %v134 = vpop.f32.mrf.mxu0
    %v135 = vadd.f32 0.0, %v134
    %136 = vmatmul.f32.gmra.mxu0 %v69
    %v137 = vpop.f32.mrf.mxu0
    %v138 = vadd.f32 0.0, %v137
    %139 = vmatmul.f32.gmra.mxu0 %v72
    %v140 = vpop.f32.mrf.mxu0
    %v141 = vadd.f32 0.0, %v140
    %142 = vmatmul.f32.gmra.mxu0 %v75
    %v143 = vpop.f32.mrf.mxu0
    %v144 = vadd.f32 0.0, %v143
    %145 = vmatmul.f32.gmra.mxu0 %v78
    %v146 = vpop.f32.mrf.mxu0
    %v147 = vadd.f32 0.0, %v146
    %148 = vmatmul.f32.gmra.mxu0 %v81
    %v149 = vpop.f32.mrf.mxu0
    %v150 = vadd.f32 0.0, %v149
    %151 = vmatmul.f32.gmra.mxu0 %v84
    %v152 = vpop.f32.mrf.mxu0
    %v153 = vadd.f32 0.0, %v152
    %154 = vmatmul.f32.gmra.mxu0 %v87
    %v155 = vpop.f32.mrf.mxu0
    %v156 = vadd.f32 0.0, %v155
    %157 = vmatmul.f32.gmra.mxu0 %v90
    %v158 = vpop.f32.mrf.mxu0
    %v159 = vadd.f32 0.0, %v158
    %160 = vmatmul.f32.gmra.mxu0 %v93
    %v161 = vpop.f32.mrf.mxu0
    %v162 = vadd.f32 0.0, %v161
    %163 = vmatmul.f32.gmra.mxu0 %v96
    %v164 = vpop.f32.mrf.mxu0
    %v165 = vadd.f32 0.0, %v164
    %166 = vdwg.mxu0
    %v167 = vld [vmem:[#allocation2] sm:$0xff]
    %v168 = vmax.f32 %v120, %v123
    %v169 = vrot.slane %v168, 4
    %v170 = vmax.f32 %v168, %v169
    %v171 = vrot.slane %v170, 2
    %v172 = vmax.f32 %v170, %v171
    %v173 = vrot.slane %v172, 1
    %v174 = vmax.f32 %v172, %v173
    %v175 = vmax.f32 %v126, %v129
    %v176 = vrot.slane %v175, 4
    %v177 = vmax.f32 %v175, %v176
    %v178 = vrot.slane %v177, 2
    %v179 = vmax.f32 %v177, %v178
    %v180 = vrot.slane %v179, 1
    %v181 = vmax.f32 %v179, %v180
    %v182 = vmax.f32 %v132, %v135
    %v183 = vrot.slane %v182, 4
    %v184 = vmax.f32 %v182, %v183
    %v185 = vrot.slane %v184, 2
    %v186 = vmax.f32 %v184, %v185
    %v187 = vrot.slane %v186, 1
    %v188 = vmax.f32 %v186, %v187
    %v189 = vmax.f32 %v138, %v141
    %v190 = vrot.slane %v189, 4
    %v191 = vmax.f32 %v189, %v190
    %v192 = vrot.slane %v191, 2
    %v193 = vmax.f32 %v191, %v192
    %v194 = vrot.slane %v193, 1
    %v195 = vmax.f32 %v193, %v194
    %v196 = vmax.f32 %v144, %v147
    %v197 = vrot.slane %v196, 4
    %v198 = vmax.f32 %v196, %v197
    %v199 = vrot.slane %v198, 2
    %v200 = vmax.f32 %v198, %v199
    %v201 = vrot.slane %v200, 1
    %v202 = vmax.f32 %v200, %v201
    %v203 = vmax.f32 %v150, %v153
    %v204 = vrot.slane %v203, 4
    %v205 = vmax.f32 %v203, %v204
    %v206 = vrot.slane %v205, 2
    %v207 = vmax.f32 %v205, %v206
    %v208 = vrot.slane %v207, 1
    %v209 = vmax.f32 %v207, %v208
    %v210 = vmax.f32 %v156, %v159
    %v211 = vrot.slane %v210, 4
    %v212 = vmax.f32 %v210, %v211
    %v213 = vrot.slane %v212, 2
    %v214 = vmax.f32 %v212, %v213
    %v215 = vrot.slane %v214, 1
    %v216 = vmax.f32 %v214, %v215
    %v217 = vmax.f32 %v162, %v165
    %v218 = vrot.slane %v217, 4
    %v219 = vmax.f32 %v217, %v218
    %v220 = vrot.slane %v219, 2
    %v221 = vmax.f32 %v219, %v220
    %v222 = vrot.slane %v221, 1
    %v223 = vmax.f32 %v221, %v222
    %vm232 = vcmask 1041409
    %v233 = vsel %vm232, %v181, %v174
    %vm234 = vcmask 1042434
    %v235 = vsel %vm234, %v188, %v233
    %vm236 = vcmask 1043459
    %v237 = vsel %vm236, %v195, %v235
    %vm238 = vcmask 1044484
    %v239 = vsel %vm238, %v202, %v237
    %vm240 = vcmask 1045509
    %v241 = vsel %vm240, %v209, %v239
    %vm242 = vcmask 1046534
    %v243 = vsel %vm242, %v216, %v241
    %vm244 = vcmask 1047559
    %v245 = vsel %vm244, %v223, %v243
    %v247 = vmax.f32 %v167, %v245
    %248 = vst [vmem:[#allocation2] sm:$0xff] %v247
    // Predicated region
    $region34: #{tpu_custom_call.1} parent=1 // pred_check
      %p249 = pneg %p27
    $region35: #{tpu_custom_call.1} parent=1 // pred_check_branch
      %251 = sbr.rel (%p249) target = $region37
    $region36: #{tpu_custom_call.1} parent=1 // pred_region
      %v252 = vld [vmem:[#allocation2] sm:$0xff]
      %v253 = vld [vmem:[%s2] sm:$0x1]
      %v255 = vperm.slane %v253, 0
      %v257 = vadd.f32 %v252, %v255
      %v258 = vld [vmem:[%s3] sm:$0xff]
      %v259 = vld [vmem:[%s3 + $0x8] sm:$0xff]
      %v260 = vld [vmem:[%s3 + $0x10] sm:$0xff]
      %v261 = vld [vmem:[%s3 + $0x18] sm:$0xff]
      %v262 = vld [vmem:[%s3 + $0x20] sm:$0xff]
      %v263 = vld [vmem:[%s3 + $0x28] sm:$0xff]
      %v264 = vld [vmem:[%s3 + $0x30] sm:$0xff]
      %v265 = vld [vmem:[%s3 + $0x38] sm:$0xff]
      %v266 = vld [vmem:[%s3 + $0x40] sm:$0xff]
      %v267 = vld [vmem:[%s3 + $0x48] sm:$0xff]
      %v268 = vld [vmem:[%s3 + $0x50] sm:$0xff]
      %v269 = vld [vmem:[%s3 + $0x58] sm:$0xff]
      %v270 = vld [vmem:[%s3 + $0x60] sm:$0xff]
      %v271 = vld [vmem:[%s3 + $0x68] sm:$0xff]
      %v272 = vld [vmem:[%s3 + $0x70] sm:$0xff]
      %v273 = vld [vmem:[%s3 + $0x78] sm:$0xff]
      %v274 = vld [vmem:[%s4] sm:$0x1]
      %v276 = vperm.slane %v274, 0
      %278 = vmatpush.msra.mxu0 %v273
      %279 = vmatpush.msra.mxu0 %v272
      %280 = vmatpush.msra.mxu0 %v271
      %281 = vmatpush.msra.mxu0 %v270
      %282 = vmatpush.msra.mxu0 %v269
      %283 = vmatpush.msra.mxu0 %v268
      %284 = vmatpush.msra.mxu0 %v267
      %285 = vmatpush.msra.mxu0 %v266
      %286 = vmatpush.msra.mxu0 %v265
      %287 = vmatpush.msra.mxu0 %v264
      %288 = vmatpush.msra.mxu0 %v263
      %289 = vmatpush.msra.mxu0 %v262
      %290 = vmatpush.msra.mxu0 %v261
      %291 = vmatpush.msra.mxu0 %v260
      %292 = vmatpush.msra.mxu0 %v259
      %293 = vmatpush.msra.mxu0 %v258
      %294 = vmatmul.f32.gmra.mxu0 %v257
      %v295 = vpop.f32.mrf.mxu0
      %v296 = vadd.f32 %v276, %v295
      %297 = vdwg.mxu0
      %v298 = vtanh.pop %v296
      %v299 = vld [vmem:[%s5] sm:$0xff]
      %v300 = vld [vmem:[%s5 + $0x8] sm:$0xff]
      %v301 = vld [vmem:[%s5 + $0x10] sm:$0xff]
      %v302 = vld [vmem:[%s5 + $0x18] sm:$0xff]
      %v303 = vld [vmem:[%s5 + $0x20] sm:$0xff]
      %v304 = vld [vmem:[%s5 + $0x28] sm:$0xff]
      %v305 = vld [vmem:[%s5 + $0x30] sm:$0xff]
      %v306 = vld [vmem:[%s5 + $0x38] sm:$0xff]
      %v307 = vld [vmem:[%s6] sm:$0x1]
      %v309 = vperm.slane %v307, 0
      %vm311 = vcmask 523264
      %v313 = vsel %vm311, %v298, 0
      %315 = vmatpush.msra.mxu0 0.0
      %316 = vmatpush.msra.mxu0 0.0
      %317 = vmatpush.msra.mxu0 0.0
      %318 = vmatpush.msra.mxu0 0.0
      %319 = vmatpush.msra.mxu0 0.0
      %320 = vmatpush.msra.mxu0 0.0
      %321 = vmatpush.msra.mxu0 0.0
      %322 = vmatpush.msra.mxu0 0.0
      %323 = vmatpush.msra.mxu0 %v306
      %324 = vmatpush.msra.mxu0 %v305
      %325 = vmatpush.msra.mxu0 %v304
      %326 = vmatpush.msra.mxu0 %v303
      %327 = vmatpush.msra.mxu0 %v302
      %328 = vmatpush.msra.mxu0 %v301
      %329 = vmatpush.msra.mxu0 %v300
      %330 = vmatpush.msra.mxu0 %v299
      %331 = vmatmul.f32.gmra.mxu0 %v313
      %v332 = vpop.f32.mrf.mxu0
      %v333 = vadd.f32 %v309, %v332
      %334 = vdwg.mxu0
      %v335 = vtanh.pop %v333
      %336 = vst [vmem:[#allocation3] sm:$0xff] %v335
    $region37: #{tpu_custom_call.1} parent=1 // pred_fallthru
      _
    // Predicated region
    $region38: #{tpu_custom_call.1} parent=1 // pred_check
      _
    $region39: #{tpu_custom_call.1} parent=1 // pred_check_branch
      %338 = sbr.rel (0) target = $region41
    $region40: #{tpu_custom_call.1} parent=1 // pred_region
      %340 = vsyncadd [#allocation4], 0
      %s342 = sshll.u32 [#allocation3], 4
      %s343 = int_to_ptr.vmem [resolvable:$true] %s342
      %s344 = sshll.u32 %s7, 4
      %s345 = int_to_ptr.hbm [resolvable:$true] %s344
      %347 = dma.vmem_to_hbm [thread:$0]  %s343, 128, %s345, [#allocation4]
    $region41: #{tpu_custom_call.1} parent=1 // pred_fallthru
      _
    // Predicated region
    $region42: #{tpu_custom_call.1} parent=1 // pred_check
      _
    $region43: #{tpu_custom_call.1} parent=1 // pred_check_branch
      %349 = sbr.rel (0) target = $region45
    $region44: #{tpu_custom_call.1} parent=1 // pred_region
      %351 = dma.done [#allocation4], 128
    $region45: #{tpu_custom_call.1} parent=1 // pred_fallthru
      _
    %352 = vsyncpa [#allocation4], 1

</llo_original>
